<compile_context>
chip_gen: v5e
topology: v5e:2x2
jax: 0.10.0
libtpu: 0.0.40
codegen_flags: <defaults>
</compile_context>

<pallas_src>
import functools

import jax
import jax.numpy as jnp
from jax import lax
from jax.experimental import pallas as pl
from jax.experimental.pallas import tpu as pltpu

LANE = 128          # all feature/channel dims are zero-padded to this (lane-dense)
SUB = 8             # sublane multiple for row counts
NEG_BIG = -1e30     # "minus infinity" that stays NaN-free under subtraction


def _rup(x, m):
    return ((x + m - 1) // m) * m


def _pad2(a, rows, cols, dtype=jnp.float32):
    out = jnp.zeros((rows, cols), dtype)
    return out.at[: a.shape[0], : a.shape[1]].set(a.astype(dtype))


# ----------------------------------------------------------------------------
# Edge MLP kernel: Linear -> ReLU -> Linear, gridded over edge tiles.
# ----------------------------------------------------------------------------
def edge_mlp_kernel(e_ref, w1_ref, b1_ref, w2_ref, b2_ref, o_ref):
    h = jnp.dot(e_ref[...], w1_ref[...], preferred_element_type=jnp.float32) + b1_ref[...]
    h = jnp.maximum(h, 0.0)
    o_ref[...] = jnp.dot(h, w2_ref[...], preferred_element_type=jnp.float32) + b2_ref[...]


def edge_mlp(edge_feat_pad, W1p, b1p, W2p, b2p, *, te):
    e_pad = edge_feat_pad.shape[0]
    return pl.pallas_call(
        edge_mlp_kernel,
        out_shape=jax.ShapeDtypeStruct((e_pad, LANE), jnp.float32),
        grid=(e_pad // te,),
        in_specs=[
            pl.BlockSpec((te, LANE), lambda t: (t, 0)),
            pl.BlockSpec((LANE, LANE), lambda t: (0, 0)),
            pl.BlockSpec((1, LANE), lambda t: (0, 0)),
            pl.BlockSpec((LANE, LANE), lambda t: (0, 0)),
            pl.BlockSpec((1, LANE), lambda t: (0, 0)),
        ],
        out_specs=pl.BlockSpec((te, LANE), lambda t: (t, 0)),
        compiler_params=pltpu.CompilerParams(
            dimension_semantics=("parallel",),
            vmem_limit_bytes=32 * 1024 * 1024),
    )(edge_feat_pad, W1p, b1p, W2p, b2p)


# ----------------------------------------------------------------------------
# GAT layer kernel: grid over edge tiles, online per-destination softmax.
#   inputs : x (N,Fp) f32, per-head weights, S/D one-hot edge operators (bf16),
#            ea (E,128) f32 edge features
#   scratch: x_lin (bf16), a_src, a_dst, running max m, denom l, weighted acc
#   output : (N, heads*128) f32, written lane-dense at the last edge tile.
# ----------------------------------------------------------------------------
def gat_layer_kernel(x_ref, wc_ref, asrc_ref, adst_ref, we_ref, ae_ref, bias_ref,
                     s_ref, d_ref, ea_ref, o_ref,
                     xlin_scr, as_scr, ad_scr, m_scr, l_scr, acc_scr,
                     *, heads, n_pad, apply_elu):
    f32 = jnp.float32
    t = pl.program_id(0)

    # ---- init (first edge tile): node-level projections + accumulators ------
    @pl.when(t == 0)
    def _init():
        x = x_ref[...]
        for h in range(heads):
            xl = jnp.dot(x, wc_ref[h], preferred_element_type=f32)          # (N, Cp)
            xlin_scr[h] = xl.astype(jnp.bfloat16)                           # bf16 gather source
            # attention-vector dots on the VPU (multiply + lane reduce)
            as_scr[h] = jnp.sum(xl * asrc_ref[h], axis=1, keepdims=True)    # (N, 1)
            ad_scr[h] = jnp.sum(xl * adst_ref[h], axis=1, keepdims=True)    # (N, 1)
            m_scr[h] = jnp.full((n_pad, 1), NEG_BIG, f32)
            l_scr[h] = jnp.zeros((n_pad, 1), f32)
            acc_scr[h] = jnp.zeros((n_pad, LANE), f32)

    s_bf = s_ref[...]                      # (TE, N) bf16 one-hot source gather
    d_bf = d_ref[...]                      # (TE, N) bf16 one-hot dest operator
    s_f = s_bf.astype(f32)
    d_f = d_bf.astype(f32)
    ea = ea_ref[...]                       # (TE, 128) f32

    # (N,N) identity mask: converts a (1,N) lane vector into an (N,1) sublane
    # vector using only iota/where/sum (guaranteed-lowerable relayout).
    rows_i = lax.broadcasted_iota(jnp.int32, (n_pad, n_pad), 0)
    cols_i = lax.broadcasted_iota(jnp.int32, (n_pad, n_pad), 1)
    eye = rows_i == cols_i

    for h in range(heads):
        # per-edge logits: a_src[src] + a_dst[dst] + a_edge
        a_src_e = jnp.dot(s_f, as_scr[h], preferred_element_type=f32)       # (TE,1)
        a_dst_e = jnp.dot(d_f, ad_scr[h], preferred_element_type=f32)       # (TE,1)
        e_lin = jnp.dot(ea, we_ref[h], preferred_element_type=f32)          # (TE,Cp)
        a_e = jnp.sum(e_lin * ae_ref[h], axis=1, keepdims=True)             # (TE,1)
        alpha = a_src_e + a_dst_e + a_e
        alpha = jnp.where(alpha > 0, alpha, 0.2 * alpha)                    # LeakyReLU(0.2)

        # --- online (flash-style) softmax over destination segments ---------
        # per-destination max of this tile's logits
        mh_row = jnp.max(jnp.where(d_f > 0, alpha, NEG_BIG),
                         axis=0, keepdims=True)                             # (1,N)
        mh_col = jnp.sum(jnp.where(eye, mh_row, 0.0), axis=1, keepdims=True)  # (N,1)
        m_old = m_scr[h]
        m_new = jnp.maximum(m_old, mh_col)
        m_scr[h] = m_new
        scale = jnp.exp(m_old - m_new)                                      # (N,1)
        m_e = jnp.dot(d_f, m_new, preferred_element_type=f32)               # gather max per edge
        p = jnp.exp(alpha - m_e)                                            # (TE,1)

        # denominator accumulation: scatter to destinations (contract D axis 0)
        l_scr[h] = l_scr[h] * scale + lax.dot_general(
            d_f, p, dimension_numbers=(((0,), (0,)), ((), ())),
            preferred_element_type=f32)                                     # (N,1)

        # message = gathered source features * attention weight (lane broadcast)
        xs = jnp.dot(s_bf, xlin_scr[h], preferred_element_type=f32)         # bf16 MXU gather
        msg = xs * p                                                        # (TE,Cp)
        acc_scr[h] = acc_scr[h] * scale + lax.dot_general(
            d_f, msg, dimension_numbers=(((0,), (0,)), ((), ())),
            preferred_element_type=f32)                                     # (N,Cp)

    # ---- finalize (last edge tile): normalize + bias (+ELU), 128-wide stores -
    @pl.when(t == pl.num_programs(0) - 1)
    def _fin():
        for h in range(heads):
            inv = pl.reciprocal(l_scr[h] + 1e-16, approx=True)              # EUP slot
            y = acc_scr[h] * inv + bias_ref[h]
            if apply_elu:
                y = jnp.where(y > 0, y, jnp.exp(jnp.minimum(y, 0.0)) - 1.0)
            o_ref[:, h * LANE:(h + 1) * LANE] = y


def gat_layer(x_pad, ea_pad, S, D, wc_st, asrc_st, adst_st, we_st, ae_st, bias_st,
              *, heads, apply_elu, te):
    n_pad, f_pad = x_pad.shape
    e_pad = S.shape[0]

    def const(shape):
        return pl.BlockSpec(shape, lambda t, _s=shape: (0,) * len(_s))

    kern = functools.partial(gat_layer_kernel, heads=heads, n_pad=n_pad,
                             apply_elu=apply_elu)
    return pl.pallas_call(
        kern,
        out_shape=jax.ShapeDtypeStruct((n_pad, heads * LANE), jnp.float32),
        grid=(e_pad // te,),
        in_specs=[
            const((n_pad, f_pad)),           # x            (loaded once)
            const((heads, f_pad, LANE)),     # W            (per head)
            const((heads, 1, LANE)),         # att_src
            const((heads, 1, LANE)),         # att_dst
            const((heads, LANE, LANE)),      # W_edge
            const((heads, 1, LANE)),         # att_edge
            const((heads, 1, LANE)),         # bias
            pl.BlockSpec((te, n_pad), lambda t: (t, 0)),   # S tile (bf16)
            pl.BlockSpec((te, n_pad), lambda t: (t, 0)),   # D tile (bf16)
            pl.BlockSpec((te, LANE), lambda t: (t, 0)),    # edge-attr tile
        ],
        out_specs=pl.BlockSpec((n_pad, heads * LANE), lambda t: (0, 0)),
        scratch_shapes=[
            pltpu.VMEM((heads, n_pad, LANE), jnp.bfloat16),   # x_lin (gather source)
            pltpu.VMEM((heads, n_pad, 1), jnp.float32),       # a_src per node
            pltpu.VMEM((heads, n_pad, 1), jnp.float32),       # a_dst per node
            pltpu.VMEM((heads, n_pad, 1), jnp.float32),       # running per-dst max
            pltpu.VMEM((heads, n_pad, 1), jnp.float32),       # running denominator
            pltpu.VMEM((heads, n_pad, LANE), jnp.float32),    # running weighted sum
        ],
        compiler_params=pltpu.CompilerParams(
            dimension_semantics=("arbitrary",),   # edge axis is a softmax reduction
            vmem_limit_bytes=32 * 1024 * 1024),
    )(x_pad, wc_st, asrc_st, adst_st, we_st, ae_st, bias_st, S, D, ea_pad)


# ----------------------------------------------------------------------------
# Glue: self loops (PyG fill_value='mean'), parameter packing, padding.
# ----------------------------------------------------------------------------
def add_self_loops_mean(edge_index, edge_attr, num_nodes):
    dst = edge_index[1]
    cnt = jnp.zeros((num_nodes,), jnp.float32).at[dst].add(1.0)
    summed = jnp.zeros((num_nodes, edge_attr.shape[1]), jnp.float32).at[dst].add(edge_attr)
    loop_attr = summed / jnp.maximum(cnt, 1.0)[:, None]     # isolated nodes -> zeros
    loop_index = jnp.arange(num_nodes, dtype=edge_index.dtype)
    ei = jnp.concatenate([edge_index, jnp.stack([loop_index, loop_index])], axis=1)
    ea = jnp.concatenate([edge_attr, loop_attr], axis=0)
    return ei, ea


def pack_head_params(att_src, att_dst, We, att_e, bias, *, heads, c):
    edge_dim = We.shape[0]
    asrc = jnp.zeros((heads, 1, LANE), jnp.float32)
    adst = jnp.zeros((heads, 1, LANE), jnp.float32)
    ae = jnp.zeros((heads, 1, LANE), jnp.float32)
    we = jnp.zeros((heads, LANE, LANE), jnp.float32)
    b = jnp.zeros((heads, 1, LANE), jnp.float32)
    for h in range(heads):
        asrc = asrc.at[h, 0, :c].set(att_src[h])
        adst = adst.at[h, 0, :c].set(att_dst[h])
        ae = ae.at[h, 0, :c].set(att_e[h])
        we = we.at[h, :edge_dim, :c].set(We[:, h * c:(h + 1) * c])
        b = b.at[h, 0, :c].set(bias[h * c:(h + 1) * c])
    return asrc, adst, we, ae, b


def edge_enhanced_gat_forward(x, edge_index, edge_feat, params, *, te=8):
    # te: edge-tile size (use 512-2048 for real graph sizes).
    (W1, b1, W2, b2,
     Wc1, att_src1, att_dst1, We1, att_e1, bias1,
     Wc2, att_src2, att_dst2, We2, att_e2, bias2) = params

    N, C_in = x.shape
    heads1, C_hid = att_src1.shape
    heads2, C_out = att_src2.shape
    E, edge_dim = edge_feat.shape
    n_pad = _rup(max(N, SUB), SUB)

    # --- edge MLP (Pallas, gridded over edge tiles) ---------------------------
    e_mlp_pad = _rup(max(E, te), te)
    ef_in = _pad2(edge_feat, e_mlp_pad, LANE)
    W1p, b1p = _pad2(W1, LANE, LANE), _pad2(b1.reshape(1, -1), 1, LANE)
    W2p, b2p = _pad2(W2, LANE, LANE), _pad2(b2.reshape(1, -1), 1, LANE)
    ef = edge_mlp(ef_in, W1p, b1p, W2p, b2p, te=te)[:E, :edge_dim]

    # --- self loops with mean-filled edge attrs (shared by both conv layers) --
    ei, ea = add_self_loops_mean(edge_index, ef, N)
    e_tot = ei.shape[1]
    e_pad = _rup(max(e_tot, te), te)

    # bf16 one-hot gather (S) / scatter (D) operators; padded rows are all-zero
    # and therefore contribute nothing to any node.
    S = _pad2(jax.nn.one_hot(ei[0], n_pad, dtype=jnp.float32), e_pad, n_pad, jnp.bfloat16)
    D = _pad2(jax.nn.one_hot(ei[1], n_pad, dtype=jnp.float32), e_pad, n_pad, jnp.bfloat16)
    ea_pad = _pad2(ea, e_pad, LANE)
    x_pad = _pad2(x, n_pad, LANE)

    # --- GATConv 1: heads=heads1, concat=True, fused ELU ----------------------
    asrc1, adst1, we1, ae1, b1_st = pack_head_params(
        att_src1, att_dst1, We1, att_e1, bias1, heads=heads1, c=C_hid)
    wc1_st = jnp.zeros((heads1, LANE, LANE), jnp.float32)
    for h in range(heads1):
        wc1_st = wc1_st.at[h, :C_in, :C_hid].set(Wc1[:, h * C_hid:(h + 1) * C_hid])

    h1 = gat_layer(x_pad, ea_pad, S, D, wc1_st, asrc1, adst1, we1, ae1, b1_st,
                   heads=heads1, apply_elu=True, te=te)      # (n_pad, heads1*128)

    # --- GATConv 2: heads=1, concat=False --------------------------------------
    asrc2, adst2, we2, ae2, b2_st = pack_head_params(
        att_src2, att_dst2, We2, att_e2, bias2, heads=heads2, c=C_out)
    # layer-1 output keeps each head's C_hid real channels at offset h*LANE,
    # so scatter Wc2's rows to those offsets (the "concat" never materializes).
    wc2_st = jnp.zeros((heads2, heads1 * LANE, LANE), jnp.float32)
    for hh in range(heads1):
        wc2_st = wc2_st.at[0, hh * LANE:hh * LANE + C_hid, :C_out].set(
            Wc2[hh * C_hid:(hh + 1) * C_hid, :])

    out = gat_layer(h1, ea_pad, S, D, wc2_st, asrc2, adst2, we2, ae2, b2_st,
                    heads=heads2, apply_elu=False, te=te)    # (n_pad, 128)
    return out[:N, :C_out]


# ----------------------------------------------------------------------------
if __name__ == "__main__":
    key = jax.random.PRNGKey(0)
    N, C_in, C_hid, C_out, heads, edge_dim, E = 8, 4, 8, 4, 2, 3, 16
    ks = jax.random.split(key, 24)

    x = jax.random.normal(ks[0], (N, C_in), jnp.float32)
    src = jax.random.randint(ks[1], (E,), 0, N, dtype=jnp.int32)
    dst = jax.random.randint(ks[2], (E,), 0, N, dtype=jnp.int32)
    edge_index = jnp.stack([src, dst])
    edge_feat = jax.random.normal(ks[3], (E, edge_dim), jnp.float32)

    def p(k, shape, scale=0.2):
        return scale * jax.random.normal(k, shape, jnp.float32)

    # edge_mlp: Linear(3,3) -> ReLU -> Linear(3,3)
    W1, b1 = p(ks[4], (edge_dim, edge_dim)), p(ks[5], (1, edge_dim))
    W2, b2 = p(ks[6], (edge_dim, edge_dim)), p(ks[7], (1, edge_dim))

    # conv1: GATConv(C_in, C_hid, heads, edge_dim=3)
    Wc1 = p(ks[8], (C_in, heads * C_hid))
    att_src1, att_dst1 = p(ks[9], (heads, C_hid)), p(ks[10], (heads, C_hid))
    We1, att_e1 = p(ks[11], (edge_dim, heads * C_hid)), p(ks[12], (heads, C_hid))
    bias1 = p(ks[13], (heads * C_hid,))

    # conv2: GATConv(heads*C_hid, C_out, heads=1, concat=False, edge_dim=3)
    Wc2 = p(ks[14], (heads * C_hid, C_out))
    att_src2, att_dst2 = p(ks[15], (1, C_out)), p(ks[16], (1, C_out))
    We2, att_e2 = p(ks[17], (edge_dim, C_out)), p(ks[18], (1, C_out))
    bias2 = p(ks[19], (C_out,))

    params = (W1, b1, W2, b2,
              Wc1, att_src1, att_dst1, We1, att_e1, bias1,
              Wc2, att_src2, att_dst2, We2, att_e2, bias2)

    out = edge_enhanced_gat_forward(x, edge_index, edge_feat, params)
    out = jax.block_until_ready(out)
    assert out.shape == (N, C_out)
    assert bool(jnp.all(jnp.isfinite(out)))
    print("KERNEL_OK")
</pallas_src>

<mosaic_0001>
module attributes {stable_mosaic.version = 11 : i64} {
  func.func @edge_mlp_kernel(%arg0: i32, %arg1: memref<8x128xf32, #tpu.memory_space<vmem>>, %arg2: memref<128x128xf32, #tpu.memory_space<vmem>>, %arg3: memref<1x128xf32, #tpu.memory_space<vmem>>, %arg4: memref<128x128xf32, #tpu.memory_space<vmem>>, %arg5: memref<1x128xf32, #tpu.memory_space<vmem>>, %arg6: memref<8x128xf32, #tpu.memory_space<vmem>>) attributes {dimension_semantics = [#tpu.dimension_semantics<parallel>], iteration_bounds = array<i64: 2>, scalar_prefetch = 0 : i64, scratch_operands = 0 : i64, tpu.core_type = #tpu.core_type<tc>, window_params = [{transform_indices = @transform_0, window_bounds = array<i64: 8, 128>}, {pipeline_mode = #tpu.pipeline_mode<synchronous>, transform_indices = @transform_1, window_bounds = array<i64: 128, 128>}, {pipeline_mode = #tpu.pipeline_mode<synchronous>, transform_indices = @transform_2, window_bounds = array<i64: 1, 128>}, {pipeline_mode = #tpu.pipeline_mode<synchronous>, transform_indices = @transform_3, window_bounds = array<i64: 128, 128>}, {pipeline_mode = #tpu.pipeline_mode<synchronous>, transform_indices = @transform_4, window_bounds = array<i64: 1, 128>}, {transform_indices = @transform_5, window_bounds = array<i64: 8, 128>}]} {
    %c0 = arith.constant 0 : index
    %c0_0 = arith.constant 0 : index
    %0 = vector.load %arg1[%c0, %c0_0] : memref<8x128xf32, #tpu.memory_space<vmem>>, vector<8x128xf32>
    %c0_1 = arith.constant 0 : index
    %c0_2 = arith.constant 0 : index
    %1 = vector.load %arg2[%c0_1, %c0_2] : memref<128x128xf32, #tpu.memory_space<vmem>>, vector<128x128xf32>
    %cst = arith.constant dense<0.000000e+00> : vector<8x128xf32>
    %2 = tpu.matmul %0, %1, %cst {dimension_numbers = #tpu.dot_dimension_numbers<[1], [0], [0], [1], [0, 0, 1, 1], [], []>} : vector<8x128xf32>, vector<128x128xf32>, vector<8x128xf32> -> vector<8x128xf32>
    %c0_3 = arith.constant 0 : index
    %c0_4 = arith.constant 0 : index
    %3 = vector.load %arg3[%c0_3, %c0_4] : memref<1x128xf32, #tpu.memory_space<vmem>>, vector<1x128xf32>
    %4 = vector.broadcast %3 : vector<1x128xf32> to vector<8x128xf32>
    %5 = arith.addf %2, %4 : vector<8x128xf32>
    %cst_5 = arith.constant 0.000000e+00 : f32
    %6 = vector.broadcast %cst_5 : f32 to vector<8x128xf32>
    %7 = arith.maximumf %5, %6 : vector<8x128xf32>
    %c0_6 = arith.constant 0 : index
    %c0_7 = arith.constant 0 : index
    %8 = vector.load %arg4[%c0_6, %c0_7] : memref<128x128xf32, #tpu.memory_space<vmem>>, vector<128x128xf32>
    %cst_8 = arith.constant dense<0.000000e+00> : vector<8x128xf32>
    %9 = tpu.matmul %7, %8, %cst_8 {dimension_numbers = #tpu.dot_dimension_numbers<[1], [0], [0], [1], [0, 0, 1, 1], [], []>} : vector<8x128xf32>, vector<128x128xf32>, vector<8x128xf32> -> vector<8x128xf32>
    %c0_9 = arith.constant 0 : index
    %c0_10 = arith.constant 0 : index
    %10 = vector.load %arg5[%c0_9, %c0_10] : memref<1x128xf32, #tpu.memory_space<vmem>>, vector<1x128xf32>
    %11 = vector.broadcast %10 : vector<1x128xf32> to vector<8x128xf32>
    %12 = arith.addf %9, %11 : vector<8x128xf32>
    %c0_11 = arith.constant 0 : index
    %c0_12 = arith.constant 0 : index
    %13 = vector.load %arg6[%c0_11, %c0_12] : memref<8x128xf32, #tpu.memory_space<vmem>>, vector<8x128xf32>
    tpu.vector_store %arg6[%c0_11, %c0_12], %12 {strides = array<i32>} : memref<8x128xf32, #tpu.memory_space<vmem>>, vector<8x128xf32>,
    return
  }
  func.func @transform_0(%arg0: i32) -> (i32, i32) {
    %c0_i32 = arith.constant 0 : i32
    %c0_i32_0 = arith.constant 0 : i32
    return %arg0, %c0_i32 : i32, i32
  }
  func.func @transform_1(%arg0: i32) -> (i32, i32) {
    %c0_i32 = arith.constant 0 : i32
    %c0_i32_0 = arith.constant 0 : i32
    %c0_i32_1 = arith.constant 0 : i32
    return %c0_i32, %c0_i32_0 : i32, i32
  }
  func.func @transform_2(%arg0: i32) -> (i32, i32) {
    %c0_i32 = arith.constant 0 : i32
    %c0_i32_0 = arith.constant 0 : i32
    %c0_i32_1 = arith.constant 0 : i32
    return %c0_i32, %c0_i32_0 : i32, i32
  }
  func.func @transform_3(%arg0: i32) -> (i32, i32) {
    %c0_i32 = arith.constant 0 : i32
    %c0_i32_0 = arith.constant 0 : i32
    %c0_i32_1 = arith.constant 0 : i32
    return %c0_i32, %c0_i32_0 : i32, i32
  }
  func.func @transform_4(%arg0: i32) -> (i32, i32) {
    %c0_i32 = arith.constant 0 : i32
    %c0_i32_0 = arith.constant 0 : i32
    %c0_i32_1 = arith.constant 0 : i32
    return %c0_i32, %c0_i32_0 : i32, i32
  }
  func.func @transform_5(%arg0: i32) -> (i32, i32) {
    %c0_i32 = arith.constant 0 : i32
    %c0_i32_0 = arith.constant 0 : i32
    return %arg0, %c0_i32 : i32, i32
  }
}

</mosaic_0001>

<llo_original>
// kernel: tpu_custom_call.1
$region0: #{tpu_custom_call.1}
  #allocation0 [shape = 'u32[]', space=smem, size = 0x4, offset = 0x4, fixed_abs, tag = 'smem constant byte address 0x4 - core index']
  #allocation1 [shape = 'u32[72,128]{1,0:T(1,128)}', space=vmem, size = 0x9000, scoped, tag = 'internal scratch']
  %s0 = inlined_call_operand.hbm [shape: f32[16,128], index: 0, kind: input, shape index: {}]
  %s1 = inlined_call_operand.hbm [shape: f32[128,128], index: 1, kind: input, shape index: {}]
  %s2 = inlined_call_operand.vmem [shape: f32[1,128], index: 2, kind: input, shape index: {}]
  %s3 = inlined_call_operand.hbm [shape: f32[128,128], index: 3, kind: input, shape index: {}]
  %s4 = inlined_call_operand.vmem [shape: f32[1,128], index: 4, kind: input, shape index: {}]
  %s5 = inlined_call_operand.hbm [shape: f32[16,128], index: 5, kind: output, shape index: {}]
  %s6 = sld [smem:[#allocation0]]
  $region65: #{tpu_custom_call.1} parent=0
    _
  %s8 = ssub.s32 1, %s6
  %s9 = scalar_select 0, %s8, %s6
  $region1: #{tpu_custom_call.1} parent=0
    #allocation2 [shape = 'u8[8192]{0}', space=vmem, size = 0x2000, scoped, tag = 'input window, operand 0']
    #allocation3 [shape = 's32[2]{0}', space=sflag, size = 0x8, scoped, tag = 'scoped memory for tpu_custom_call.1']
    #allocation4 [shape = 's32[2]{0}', space=sflag, size = 0x8, scoped, tag = 'scoped memory for tpu_custom_call.1']
    #allocation5 [shape = 'u8[65536]{0}', space=vmem, size = 0x10000, scoped, tag = 'input window, operand 1, single buffered']
    #allocation6 [shape = 's32[1]{0}', space=sflag, size = 0x4, scoped, tag = 'scoped memory for tpu_custom_call.1']
    #allocation7 [shape = 'u8[65536]{0}', space=vmem, size = 0x10000, scoped, tag = 'input window, operand 3, single buffered']
    #allocation8 [shape = 'u8[8192]{0}', space=vmem, size = 0x2000, scoped, tag = 'output window, operand 0']
    %10 = vsyncpa [#allocation3], 0
    %s11 = scalar_lea.sflag [#allocation3], 1
    %12 = vsyncpa %s11, 0
    %13 = vsyncpa [#allocation6], 0
    %14 = vsyncpa [#allocation4], 0
    %s15 = scalar_lea.sflag [#allocation4], 1
    %16 = vsyncpa %s15, 0
    loop: start=0, step=1, limit=4
    $region2: #{tpu_custom_call.1} parent=1 // loop_pre_header
      _
    $region3: #{tpu_custom_call.1} parent=1 // loop_header
      %s18 = sphi 0, %s22
      %p19 = scmp.ge.s32.totalorder %s18, 4
      %s28 = sphi 0, %s30
      %s31 = sphi 0, %s28
      %s32 = sphi 0, %s31
      %s48 = sphi 0, %s32
      %s52 = sphi 0, %s52
      %s54 = sphi 0, %s52
      %s55 = sphi 0, %s54
      %s69 = sphi 0, %s55
      %s73 = sphi 0, %s73
      %s75 = sphi 0, %s73
      %s76 = sphi 0, %s75
      %s90 = sphi 0, %s76
      %s94 = sphi 0, %s94
      %s96 = sphi 0, %s94
      %s97 = sphi 0, %s96
      %s111 = sphi 0, %s97
      %s115 = sphi 0, %s115
      %s117 = sphi 0, %s115
      %s118 = sphi 0, %s117
      %s132 = sphi 0, %s118
      %s138 = sphi 0, %s140
      %s141 = sphi 0, %s138
      %s142 = sphi 0, %s141
      %s158 = sphi 0, %s142
    $region4: #{tpu_custom_call.1} parent=1 // loop_header_branch
      %21 = sbr.rel (%p19) target = $region8
    $region5: #{tpu_custom_call.1} parent=1 // loop_body
      %s23 = ssub.s32 %s18, 1
      %s24 = ssub.s32 %s18, 2
      %s25 = sadd.s32 %s18, 1
      %s26 = ssub.s32 %s18, %s25
      %p27 = scmp.eq.s32.totalorder %s26, 0
      %s29 = sadd.s32 %s28, 1
      %s30 = scalar_select %p27, %s28, %s29
      %p33 = pneg %p27
      %p34 = scmp.eq.s32.totalorder %s18, 1
      %p35 = por %p33, %p34
      %p36 = scmp.ne.s32.totalorder %s28, %s31
      %p37 = scmp.eq.s32.totalorder %s18, 0
      %p38 = por %p36, %p37
      %p39 = scmp.ne.s32.totalorder %s28, %s31
      %p40 = scmp.eq.s32.totalorder %s23, 1
      %p41 = por %p39, %p40
      %p42 = scmp.ne.s32.totalorder %s31, %s32
      %p43 = scmp.eq.s32.totalorder %s23, 0
      %p44 = por %p42, %p43
      %p45 = scmp.ne.s32.totalorder %s31, %s32
      %p46 = scmp.eq.s32.totalorder %s24, 1
      %p47 = por %p45, %p46
      %p49 = scmp.ne.s32.totalorder %s32, %s48
      %p50 = scmp.eq.s32.totalorder %s24, 0
      %p51 = por %p49, %p50
      %s53 = sadd.s32 %s52, 1
      %p56 = scmp.eq.s32.totalorder %s18, 1
      %p57 = scmp.ne.s32.totalorder %s52, %s54
      %p58 = scmp.eq.s32.totalorder %s18, 0
      %p59 = por %p57, %p58
      %p60 = scmp.ne.s32.totalorder %s52, %s54
      %p61 = scmp.eq.s32.totalorder %s23, 1
      %p62 = por %p60, %p61
      %p63 = scmp.ne.s32.totalorder %s54, %s55
      %p64 = scmp.eq.s32.totalorder %s23, 0
      %p65 = por %p63, %p64
      %p66 = scmp.ne.s32.totalorder %s54, %s55
      %p67 = scmp.eq.s32.totalorder %s24, 1
      %p68 = por %p66, %p67
      %p70 = scmp.ne.s32.totalorder %s55, %s69
      %p71 = scmp.eq.s32.totalorder %s24, 0
      %p72 = por %p70, %p71
      %s74 = sadd.s32 %s73, 1
      %p77 = scmp.eq.s32.totalorder %s18, 1
      %p78 = scmp.ne.s32.totalorder %s73, %s75
      %p79 = scmp.eq.s32.totalorder %s18, 0
      %p80 = por %p78, %p79
      %p81 = scmp.ne.s32.totalorder %s73, %s75
      %p82 = scmp.eq.s32.totalorder %s23, 1
      %p83 = por %p81, %p82
      %p84 = scmp.ne.s32.totalorder %s75, %s76
      %p85 = scmp.eq.s32.totalorder %s23, 0
      %p86 = por %p84, %p85
      %p87 = scmp.ne.s32.totalorder %s75, %s76
      %p88 = scmp.eq.s32.totalorder %s24, 1
      %p89 = por %p87, %p88
      %p91 = scmp.ne.s32.totalorder %s76, %s90
      %p92 = scmp.eq.s32.totalorder %s24, 0
      %p93 = por %p91, %p92
      %s95 = sadd.s32 %s94, 1
      %p98 = scmp.eq.s32.totalorder %s18, 1
      %p99 = scmp.ne.s32.totalorder %s94, %s96
      %p100 = scmp.eq.s32.totalorder %s18, 0
      %p101 = por %p99, %p100
      %p102 = scmp.ne.s32.totalorder %s94, %s96
      %p103 = scmp.eq.s32.totalorder %s23, 1
      %p104 = por %p102, %p103
      %p105 = scmp.ne.s32.totalorder %s96, %s97
      %p106 = scmp.eq.s32.totalorder %s23, 0
      %p107 = por %p105, %p106
      %p108 = scmp.ne.s32.totalorder %s96, %s97
      %p109 = scmp.eq.s32.totalorder %s24, 1
      %p110 = por %p108, %p109
      %p112 = scmp.ne.s32.totalorder %s97, %s111
      %p113 = scmp.eq.s32.totalorder %s24, 0
      %p114 = por %p112, %p113
      %s116 = sadd.s32 %s115, 1
      %p119 = scmp.eq.s32.totalorder %s18, 1
      %p120 = scmp.ne.s32.totalorder %s115, %s117
      %p121 = scmp.eq.s32.totalorder %s18, 0
      %p122 = por %p120, %p121
      %p123 = scmp.ne.s32.totalorder %s115, %s117
      %p124 = scmp.eq.s32.totalorder %s23, 1
      %p125 = por %p123, %p124
      %p126 = scmp.ne.s32.totalorder %s117, %s118
      %p127 = scmp.eq.s32.totalorder %s23, 0
      %p128 = por %p126, %p127
      %p129 = scmp.ne.s32.totalorder %s117, %s118
      %p130 = scmp.eq.s32.totalorder %s24, 1
      %p131 = por %p129, %p130
      %p133 = scmp.ne.s32.totalorder %s118, %s132
      %p134 = scmp.eq.s32.totalorder %s24, 0
      %p135 = por %p133, %p134
      %s136 = ssub.s32 %s18, %s25
      %p137 = scmp.eq.s32.totalorder %s136, 0
      %s139 = sadd.s32 %s138, 1
      %s140 = scalar_select %p137, %s138, %s139
      %p143 = pneg %p137
      %p144 = scmp.eq.s32.totalorder %s18, 1
      %p145 = por %p143, %p144
      %p146 = scmp.ne.s32.totalorder %s138, %s141
      %p147 = scmp.eq.s32.totalorder %s18, 0
      %p148 = por %p146, %p147
      %p149 = scmp.ne.s32.totalorder %s138, %s141
      %p150 = scmp.eq.s32.totalorder %s23, 1
      %p151 = por %p149, %p150
      %p152 = scmp.ne.s32.totalorder %s141, %s142
      %p153 = scmp.eq.s32.totalorder %s23, 0
      %p154 = por %p152, %p153
      %p155 = scmp.ne.s32.totalorder %s141, %s142
      %p156 = scmp.eq.s32.totalorder %s24, 1
      %p157 = por %p155, %p156
      %p159 = scmp.ne.s32.totalorder %s142, %s158
      %p160 = scmp.eq.s32.totalorder %s24, 0
      %p161 = por %p159, %p160
      %p162 = scmp.le.s32.totalorder 1, %s18
      %p163 = scmp.lt.s32.totalorder %s18, 3
      %p164 = pnand %p162, %p163
      %p165 = pneg %p164
      // Predicated region
      $region9: #{tpu_custom_call.1} parent=5 // pred_check
        _
      $region10: #{tpu_custom_call.1} parent=5 // pred_check_branch
        %167 = sbr.rel (%p164) target = $region12
      $region11: #{tpu_custom_call.1} parent=5 // pred_region
        %s168 = ssub.s32 %s18, 1
        // Predicated region
        $region13: #{tpu_custom_call.1} parent=11 // pred_check
          %p169 = pneg %p65
        $region14: #{tpu_custom_call.1} parent=11 // pred_check_branch
          %171 = sbr.rel (%p169) target = $region16
        $region15: #{tpu_custom_call.1} parent=11 // pred_region
          %173 = vsyncadd [#allocation6], 0
          %s174 = sshll.u32 %s1, 4
          %s175 = int_to_ptr.hbm [resolvable:$true] %s174
          %s176 = sshll.u32 [#allocation5], 4
          %s177 = int_to_ptr.vmem [resolvable:$true] %s176
          %182 = dma.hbm_to_vmem [thread:$0]  %s175, 2048, %s177, [#allocation6], 128, 128, 8
        $region16: #{tpu_custom_call.1} parent=11 // pred_fallthru
          _
        // Predicated region
        $region17: #{tpu_custom_call.1} parent=11 // pred_check
          %p183 = pneg %p86
        $region18: #{tpu_custom_call.1} parent=11 // pred_check_branch
          %185 = sbr.rel (%p183) target = $region20
        $region19: #{tpu_custom_call.1} parent=11 // pred_region
          _
        $region20: #{tpu_custom_call.1} parent=11 // pred_fallthru
          _
        // Predicated region
        $region21: #{tpu_custom_call.1} parent=11 // pred_check
          %p186 = pneg %p107
        $region22: #{tpu_custom_call.1} parent=11 // pred_check_branch
          %188 = sbr.rel (%p186) target = $region24
        $region23: #{tpu_custom_call.1} parent=11 // pred_region
          %190 = vsyncadd [#allocation6], 0
          %s191 = sshll.u32 %s3, 4
          %s192 = int_to_ptr.hbm [resolvable:$true] %s191
          %s193 = sshll.u32 [#allocation7], 4
          %s194 = int_to_ptr.vmem [resolvable:$true] %s193
          %199 = dma.hbm_to_vmem [thread:$0]  %s192, 2048, %s194, [#allocation6], 128, 128, 8
        $region24: #{tpu_custom_call.1} parent=11 // pred_fallthru
          _
        // Predicated region
        $region25: #{tpu_custom_call.1} parent=11 // pred_check
          %p200 = pneg %p128
        $region26: #{tpu_custom_call.1} parent=11 // pred_check_branch
          %202 = sbr.rel (%p200) target = $region28
        $region27: #{tpu_custom_call.1} parent=11 // pred_region
          _
        $region28: #{tpu_custom_call.1} parent=11 // pred_fallthru
          _
      $region12: #{tpu_custom_call.1} parent=5 // pred_fallthru
        _
      %p203 = scmp.lt.s32.totalorder %s18, 2
      // Predicated region
      $region29: #{tpu_custom_call.1} parent=5 // pred_check
        %p204 = pneg %p203
      $region30: #{tpu_custom_call.1} parent=5 // pred_check_branch
        %206 = sbr.rel (%p204) target = $region32
      $region31: #{tpu_custom_call.1} parent=5 // pred_region
        // Predicated region
        $region33: #{tpu_custom_call.1} parent=31 // pred_check
          %p207 = pneg %p38
        $region34: #{tpu_custom_call.1} parent=31 // pred_check_branch
          %209 = sbr.rel (%p207) target = $region36
        $region35: #{tpu_custom_call.1} parent=31 // pred_region
          %s210 = sand.u32 %s28, 1
          %s211 = scalar_lea.sflag [#allocation3], %s210
          %s212 = sand.u32 %s28, 1
          %s213 = smul.addr %s212, 8
          %s214 = scalar_lea.vmem [#allocation2], %s213
          %216 = vsyncadd %s211, 0
          %s217 = smul.addr %s18, 8
          %s218 = scalar_lea.hbm %s0, %s217
          %s220 = sshll.u32 %s218, 4
          %s221 = int_to_ptr.hbm [resolvable:$true] %s220
          %s222 = sshll.u32 %s214, 4
          %s223 = int_to_ptr.vmem [resolvable:$true] %s222
          %225 = dma.hbm_to_vmem [thread:$0]  %s221, 128, %s223, %s211
        $region36: #{tpu_custom_call.1} parent=31 // pred_fallthru
          _
      $region32: #{tpu_custom_call.1} parent=5 // pred_fallthru
        _
      %p226 = scmp.le.s32.totalorder 1, %s18
      %p227 = scmp.lt.s32.totalorder %s18, 3
      %p228 = pnand %p226, %p227
      %p229 = pneg %p228
      // Predicated region
      $region37: #{tpu_custom_call.1} parent=5 // pred_check
        _
      $region38: #{tpu_custom_call.1} parent=5 // pred_check_branch
        %231 = sbr.rel (%p228) target = $region40
      $region39: #{tpu_custom_call.1} parent=5 // pred_region
        %s232 = ssub.s32 %s18, 1
        %s233 = sand.u32 %s31, 1
        %s234 = scalar_lea.sflag [#allocation3], %s233
        %s235 = sand.u32 %s31, 1
        %s236 = smul.addr %s235, 8
        %s237 = scalar_lea.vmem [#allocation2], %s236
        // Predicated region
        $region41: #{tpu_custom_call.1} parent=39 // pred_check
          %p238 = pneg %p44
        $region42: #{tpu_custom_call.1} parent=39 // pred_check_branch
          %240 = sbr.rel (%p238) target = $region44
        $region43: #{tpu_custom_call.1} parent=39 // pred_region
          %242 = dma.done %s234, 128
        $region44: #{tpu_custom_call.1} parent=39 // pred_fallthru
          _
        // Predicated region
        $region45: #{tpu_custom_call.1} parent=39 // pred_check
          %p243 = pneg %p65
        $region46: #{tpu_custom_call.1} parent=39 // pred_check_branch
          %245 = sbr.rel (%p243) target = $region48
        $region47: #{tpu_custom_call.1} parent=39 // pred_region
          %247 = dma.done [#allocation6], 2048
        $region48: #{tpu_custom_call.1} parent=39 // pred_fallthru
          _
        // Predicated region
        $region49: #{tpu_custom_call.1} parent=39 // pred_check
          %p248 = pneg %p107
        $region50: #{tpu_custom_call.1} parent=39 // pred_check_branch
          %250 = sbr.rel (%p248) target = $region52
        $region51: #{tpu_custom_call.1} parent=39 // pred_region
          %252 = dma.done [#allocation6], 2048
        $region52: #{tpu_custom_call.1} parent=39 // pred_fallthru
          _
        %s253 = sand.u32 %s31, 1
        %s254 = scalar_lea.sflag [#allocation3], %s253
        %s255 = sand.u32 %s31, 1
        %s256 = smul.addr %s255, 8
        %s257 = scalar_lea.vmem [#allocation2], %s256
        %p258 = pneg %p44
        %p259 = pneg %p41
        %p260 = pneg %p65
        %p261 = pneg %p62
        %p262 = pneg %p86
        %p263 = pneg %p83
        %p264 = pneg %p107
        %p265 = pneg %p104
        %p266 = pneg %p128
        %p267 = pneg %p125
        %p268 = pneg %p154
        %p269 = pneg %p151
        %s270 = sand.u32 %s141, 1
        %s271 = scalar_lea.sflag [#allocation4], %s270
        %s272 = sand.u32 %s141, 1
        %s273 = smul.addr %s272, 8
        %s274 = scalar_lea.vmem [#allocation8], %s273
        %v275 = vld [vmem:[%s237] sm:$0xff]
        %v276 = vld [vmem:[#allocation5] sm:$0xff]
        %v277 = vld [vmem:[#allocation5 + $0x8] sm:$0xff]
        %v278 = vld [vmem:[#allocation5 + $0x10] sm:$0xff]
        %v279 = vld [vmem:[#allocation5 + $0x18] sm:$0xff]
        %v280 = vld [vmem:[#allocation5 + $0x20] sm:$0xff]
        %v281 = vld [vmem:[#allocation5 + $0x28] sm:$0xff]
        %v282 = vld [vmem:[#allocation5 + $0x30] sm:$0xff]
        %v283 = vld [vmem:[#allocation5 + $0x38] sm:$0xff]
        %v284 = vld [vmem:[#allocation5 + $0x40] sm:$0xff]
        %v285 = vld [vmem:[#allocation5 + $0x48] sm:$0xff]
        %v286 = vld [vmem:[#allocation5 + $0x50] sm:$0xff]
        %v287 = vld [vmem:[#allocation5 + $0x58] sm:$0xff]
        %v288 = vld [vmem:[#allocation5 + $0x60] sm:$0xff]
        %v289 = vld [vmem:[#allocation5 + $0x68] sm:$0xff]
        %v290 = vld [vmem:[#allocation5 + $0x70] sm:$0xff]
        %v291 = vld [vmem:[#allocation5 + $0x78] sm:$0xff]
        %v292 = vld [vmem:[%s2] sm:$0x1]
        %v294 = vperm.slane %v292, 0
        %296 = vmatpush.msra.mxu0 %v291
        %297 = vmatpush.msra.mxu0 %v290
        %298 = vmatpush.msra.mxu0 %v289
        %299 = vmatpush.msra.mxu0 %v288
        %300 = vmatpush.msra.mxu0 %v287
        %301 = vmatpush.msra.mxu0 %v286
        %302 = vmatpush.msra.mxu0 %v285
        %303 = vmatpush.msra.mxu0 %v284
        %304 = vmatpush.msra.mxu0 %v283
        %305 = vmatpush.msra.mxu0 %v282
        %306 = vmatpush.msra.mxu0 %v281
        %307 = vmatpush.msra.mxu0 %v280
        %308 = vmatpush.msra.mxu0 %v279
        %309 = vmatpush.msra.mxu0 %v278
        %310 = vmatpush.msra.mxu0 %v277
        %311 = vmatpush.msra.mxu0 %v276
        %312 = vmatmul.f32.gmra.mxu0 %v275
        %v313 = vpop.f32.mrf.mxu0
        %v314 = vadd.f32 %v294, %v313
        %315 = vdwg.mxu0
        %v316 = vmax.f32 %v314, 0.0
        %v317 = vld [vmem:[#allocation7] sm:$0xff]
        %v318 = vld [vmem:[#allocation7 + $0x8] sm:$0xff]
        %v319 = vld [vmem:[#allocation7 + $0x10] sm:$0xff]
        %v320 = vld [vmem:[#allocation7 + $0x18] sm:$0xff]
        %v321 = vld [vmem:[#allocation7 + $0x20] sm:$0xff]
        %v322 = vld [vmem:[#allocation7 + $0x28] sm:$0xff]
        %v323 = vld [vmem:[#allocation7 + $0x30] sm:$0xff]
        %v324 = vld [vmem:[#allocation7 + $0x38] sm:$0xff]
        %v325 = vld [vmem:[#allocation7 + $0x40] sm:$0xff]
        %v326 = vld [vmem:[#allocation7 + $0x48] sm:$0xff]
        %v327 = vld [vmem:[#allocation7 + $0x50] sm:$0xff]
        %v328 = vld [vmem:[#allocation7 + $0x58] sm:$0xff]
        %v329 = vld [vmem:[#allocation7 + $0x60] sm:$0xff]
        %v330 = vld [vmem:[#allocation7 + $0x68] sm:$0xff]
        %v331 = vld [vmem:[#allocation7 + $0x70] sm:$0xff]
        %v332 = vld [vmem:[#allocation7 + $0x78] sm:$0xff]
        %v333 = vld [vmem:[%s4] sm:$0x1]
        %v335 = vperm.slane %v333, 0
        %337 = vmatpush.msra.mxu0 %v332
        %338 = vmatpush.msra.mxu0 %v331
        %339 = vmatpush.msra.mxu0 %v330
        %340 = vmatpush.msra.mxu0 %v329
        %341 = vmatpush.msra.mxu0 %v328
        %342 = vmatpush.msra.mxu0 %v327
        %343 = vmatpush.msra.mxu0 %v326
        %344 = vmatpush.msra.mxu0 %v325
        %345 = vmatpush.msra.mxu0 %v324
        %346 = vmatpush.msra.mxu0 %v323
        %347 = vmatpush.msra.mxu0 %v322
        %348 = vmatpush.msra.mxu0 %v321
        %349 = vmatpush.msra.mxu0 %v320
        %350 = vmatpush.msra.mxu0 %v319
        %351 = vmatpush.msra.mxu0 %v318
        %352 = vmatpush.msra.mxu0 %v317
        %353 = vmatmul.f32.gmra.mxu0 %v316
        %v354 = vpop.f32.mrf.mxu0
        %v355 = vadd.f32 %v335, %v354
        %356 = vdwg.mxu0
        %357 = vst [vmem:[%s274] sm:$0xff] %v355
        %s358 = sand.u32 %s141, 1
        %s359 = scalar_lea.sflag [#allocation4], %s358
        %s360 = sand.u32 %s141, 1
        %s361 = smul.addr %s360, 8
        %s362 = scalar_lea.vmem [#allocation8], %s361
        // Predicated region
        $region53: #{tpu_custom_call.1} parent=39 // pred_check
          %p363 = pneg %p151
        $region54: #{tpu_custom_call.1} parent=39 // pred_check_branch
          %365 = sbr.rel (%p363) target = $region56
        $region55: #{tpu_custom_call.1} parent=39 // pred_region
          %367 = vsyncadd %s359, 0
          %s368 = smul.addr %s23, 8
          %s369 = scalar_lea.hbm %s5, %s368
          %s371 = sshll.u32 %s362, 4
          %s372 = int_to_ptr.vmem [resolvable:$true] %s371
          %s373 = sshll.u32 %s369, 4
          %s374 = int_to_ptr.hbm [resolvable:$true] %s373
          %376 = dma.vmem_to_hbm [thread:$0]  %s372, 128, %s374, %s359
        $region56: #{tpu_custom_call.1} parent=39 // pred_fallthru
          _
      $region40: #{tpu_custom_call.1} parent=5 // pred_fallthru
        _
      %p377 = scmp.le.s32.totalorder 2, %s18
      // Predicated region
      $region57: #{tpu_custom_call.1} parent=5 // pred_check
        %p378 = pneg %p377
      $region58: #{tpu_custom_call.1} parent=5 // pred_check_branch
        %380 = sbr.rel (%p378) target = $region60
      $region59: #{tpu_custom_call.1} parent=5 // pred_region
        %s381 = ssub.s32 %s18, 2
        // Predicated region
        $region61: #{tpu_custom_call.1} parent=59 // pred_check
          %p382 = pneg %p157
        $region62: #{tpu_custom_call.1} parent=59 // pred_check_branch
          %384 = sbr.rel (%p382) target = $region64
        $region63: #{tpu_custom_call.1} parent=59 // pred_region
          %s385 = sand.u32 %s142, 1
          %s386 = scalar_lea.sflag [#allocation4], %s385
          %s387 = sand.u32 %s142, 1
          %s388 = smul.addr %s387, 8
          %s389 = scalar_lea.vmem [#allocation8], %s388
          %391 = dma.done %s386, 128
        $region64: #{tpu_custom_call.1} parent=59 // pred_fallthru
          _
      $region60: #{tpu_custom_call.1} parent=5 // pred_fallthru
        _
    $region6: #{tpu_custom_call.1} parent=1 // loop_footer
      %s22 = sadd.s32 1, %s18
    $region7: #{tpu_custom_call.1} parent=1 // loop_footer_branch
      %17 = sbr.rel target = $region3
    $region8: #{tpu_custom_call.1} parent=1 // loop_exit
      _
    %392 = vsyncpa [#allocation3], 1
    %s393 = scalar_lea.sflag [#allocation3], 1
    %394 = vsyncpa %s393, 1
    %395 = vsyncpa [#allocation6], 1
    %396 = vsyncpa [#allocation4], 1
    %s397 = scalar_lea.sflag [#allocation4], 1
    %398 = vsyncpa %s397, 1

</llo_original>
